<compile_context>
chip_gen: v6e
topology: v6e:2x2x1
jax: 0.10.0
libtpu: 0.0.40
codegen_flags: <defaults>
</compile_context>

<pallas_src>
import jax
import jax.numpy as jnp
from jax.experimental import pallas as pl
from jax.experimental.pallas import tpu as pltpu


_LANE = 1024                        # lane-dense last dim (multiple of 128)
_TARGET_BLOCK_BYTES = 4 * 1024 * 1024   # ~4 MiB per input block (per perf review)
_VMEM_LIMIT_BYTES = 48 * 1024 * 1024    # >= usage (~16 MiB), <= v7x physical 64 MiB


def _zmuv_kernel(stats_ref, x_ref, o_ref):
    # stats_ref lives in SMEM: [mean, inv_std]
    mean = stats_ref[0]
    inv_std = stats_ref[1]
    o_ref[...] = ((x_ref[...] - mean) * inv_std).astype(o_ref.dtype)


def zmuv_forward(x, mean, mean2):
    """Pallas equivalent of ZmuvTransform.forward: (x - mean) / sqrt(mean2 - mean**2)."""
    orig_shape = x.shape
    orig_dtype = x.dtype
    n = x.size
    itemsize = jnp.dtype(orig_dtype).itemsize

    # Scalar math done once in glue: mean and inv_std = 1/std.
    mean_s = jnp.reshape(mean, ()).astype(jnp.float32)
    var = jnp.reshape(mean2, ()).astype(jnp.float32) - mean_s * mean_s
    inv_std = 1.0 / jnp.sqrt(var)   # NaN if var<0, inf if var==0 (matches torch corner cases)
    stats = jnp.stack([mean_s, inv_std])   # shape (2,) -> SMEM

    # Flatten (zero-copy, row-major) to a lane-dense (rows, _LANE) slab.
    x_flat = x.reshape(-1)
    rows = (n + _LANE - 1) // _LANE          # static Python int
    n_rows_elems = rows * _LANE
    has_tail = n_rows_elems != n             # flat size not a multiple of 1024

    if has_tail:
        # Rare unaligned-tail path (< one lane row of padding).  jnp.pad / the
        # output slice do materialize a copy, but any flat size that is a
        # multiple of 1024 elements stays fully zero-copy below.
        x_flat = jnp.pad(x_flat, (0, n_rows_elems - n))
    x2d = x_flat.reshape(rows, _LANE)        # zero-copy when not padded

    # Bytes-based block sizing: ~4 MiB per input block regardless of dtype.
    # (f32 -> 1024 rows, bf16 -> 2048, int8 -> 4096; all multiples of the
    #  packed-sublane requirement.)
    target_rows = _TARGET_BLOCK_BYTES // (_LANE * itemsize)
    if rows <= target_rows:
        row_tile = rows                      # single block == full extent (always legal)
        grid = (1,)
    else:
        row_tile = target_rows
        grid = ((rows + row_tile - 1) // row_tile,)   # ragged last block is masked by Pallas

    out2d = pl.pallas_call(
        _zmuv_kernel,
        out_shape=jax.ShapeDtypeStruct((rows, _LANE), orig_dtype),
        grid_spec=pltpu.PrefetchScalarGridSpec(
            num_scalar_prefetch=0,
            grid=grid,
            in_specs=[
                pl.BlockSpec(memory_space=pltpu.SMEM),               # stats [mean, inv_std]
                pl.BlockSpec((row_tile, _LANE), lambda i: (i, 0)),   # x block (~4 MiB)
            ],
            out_specs=pl.BlockSpec((row_tile, _LANE), lambda i: (i, 0)),
        ),
        compiler_params=pltpu.CompilerParams(
            # "parallel" lets the runtime shard the stream over v7x's 2 TCs;
            # neutral on v5e/v6e.
            dimension_semantics=("parallel",),
            vmem_limit_bytes=_VMEM_LIMIT_BYTES,
        ),
        cost_estimate=pl.CostEstimate(
            flops=2 * n,
            transcendentals=0,
            bytes_accessed=2 * n * itemsize,
        ),
    )(stats, x2d)

    out_flat = out2d.reshape(-1)
    if has_tail:
        out_flat = out_flat[:n]
    return out_flat.reshape(orig_shape)


def zmuv_update(total, mean, mean2, data, mask=None):
    """Plain-JAX replica of ZmuvTransform.update (buffer bookkeeping, not a hot path)."""
    if mask is not None:
        data = data * mask
        mask_size = jnp.sum(mask)
    else:
        mask_size = jnp.asarray(data.size, jnp.float32)
    new_mean = (jnp.sum(data) + mean * total) / (total + mask_size)
    new_mean2 = (jnp.sum(data ** 2) + mean2 * total) / (total + mask_size)
    new_total = total + mask_size
    return new_total, new_mean, new_mean2


def _run_case(key, shape):
    x = jax.random.normal(key, shape, dtype=jnp.float32) * 3.0 + 1.5
    # Buffers from __init__ are zeros; run one update() pass (as intended use)
    # to obtain valid statistics before forward.
    total = jnp.zeros((1,), jnp.float32)
    mean = jnp.zeros((1,), jnp.float32)
    mean2 = jnp.zeros((1,), jnp.float32)
    total, mean, mean2 = zmuv_update(total, mean, mean2, x)

    out = jax.block_until_ready(zmuv_forward(x, mean, mean2))

    ref = (x - mean) / jnp.sqrt(mean2 - mean ** 2)
    assert out.shape == x.shape and out.dtype == x.dtype
    assert jnp.allclose(out, ref, atol=1e-5, rtol=1e-5)


if __name__ == "__main__":
    root = jax.random.PRNGKey(0)
    k1, k2, k3 = jax.random.split(root, 3)

    # Small canonical shape (flat size 2048 -> 2 lane rows, single block,
    # fully zero-copy path).
    _run_case(k1, (2, 4, 16, 16))

    # Non-lane-aligned shape (flat size 462) -> exercises the tail pad/slice path.
    _run_case(k2, (2, 3, 7, 11))

    # Lane-aligned but ragged grid (1032 rows > 1024-row block) -> exercises
    # the masked final block with grid > 1, still zero-copy.
    _run_case(k3, (3, 8, 43, 1024))

    print("KERNEL_OK")
</pallas_src>

<mosaic_0001>
module attributes {stable_mosaic.version = 11 : i64} {
  func.func @_zmuv_kernel(%arg0: i32, %arg1: memref<2xf32, #tpu.memory_space<smem>>, %arg2: memref<2x1024xf32, #tpu.memory_space<vmem>>, %arg3: memref<2x1024xf32, #tpu.memory_space<vmem>>) attributes {dimension_semantics = [#tpu.dimension_semantics<parallel>], iteration_bounds = array<i64: 1>, scalar_prefetch = 0 : i64, scratch_operands = 0 : i64, tpu.core_type = #tpu.core_type<tc>, window_params = [{transform_indices = @transform_0, window_bounds = array<i64: 2>}, {transform_indices = @transform_1, window_bounds = array<i64: 2, 1024>}, {transform_indices = @transform_2, window_bounds = array<i64: 2, 1024>}]} {
    %c0 = arith.constant 0 : index
    %0 = memref.load %arg1[%c0] : memref<2xf32, #tpu.memory_space<smem>>
    %c1 = arith.constant 1 : index
    %1 = memref.load %arg1[%c1] : memref<2xf32, #tpu.memory_space<smem>>
    %c0_0 = arith.constant 0 : index
    %c0_1 = arith.constant 0 : index
    %2 = vector.load %arg2[%c0_0, %c0_1] : memref<2x1024xf32, #tpu.memory_space<vmem>>, vector<2x1024xf32>
    %3 = vector.broadcast %0 : f32 to vector<2x1024xf32>
    %4 = arith.subf %2, %3 : vector<2x1024xf32>
    %5 = vector.broadcast %1 : f32 to vector<2x1024xf32>
    %6 = arith.mulf %4, %5 : vector<2x1024xf32>
    %c0_2 = arith.constant 0 : index
    %c0_3 = arith.constant 0 : index
    %7 = vector.load %arg3[%c0_2, %c0_3] : memref<2x1024xf32, #tpu.memory_space<vmem>>, vector<2x1024xf32>
    tpu.vector_store %arg3[%c0_2, %c0_3], %6 {strides = array<i32>} : memref<2x1024xf32, #tpu.memory_space<vmem>>, vector<2x1024xf32>,
    return
  }
  func.func @transform_0(%arg0: i32) -> i32 {
    %c0_i32 = arith.constant 0 : i32
    %c0_i32_0 = arith.constant 0 : i32
    return %c0_i32 : i32
  }
  func.func @transform_1(%arg0: i32) -> (i32, i32) {
    %c0_i32 = arith.constant 0 : i32
    %c0_i32_0 = arith.constant 0 : i32
    return %arg0, %c0_i32 : i32, i32
  }
  func.func @transform_2(%arg0: i32) -> (i32, i32) {
    %c0_i32 = arith.constant 0 : i32
    %c0_i32_0 = arith.constant 0 : i32
    return %arg0, %c0_i32 : i32, i32
  }
}

</mosaic_0001>

<llo_original>
// kernel: tpu_custom_call.1
$region0: #{tpu_custom_call.1}
  #allocation0 [shape = 'u32[]', space=smem, size = 0x4, offset = 0x4, fixed_abs, tag = 'smem constant byte address 0x4 - core index']
  #allocation1 [shape = 'u32[144,128]{1,0:T(1,128)}', space=vmem, size = 0x12000, scoped, tag = 'internal scratch']
  %s0 = inlined_call_operand.hbm [shape: f32[2], index: 0, kind: input, shape index: {}]
  %s1 = inlined_call_operand.hbm [shape: f32[2,1024], index: 1, kind: input, shape index: {}]
  %s2 = inlined_call_operand.hbm [shape: f32[2,1024], index: 2, kind: output, shape index: {}]
  %s3 = sld [smem:[#allocation0]]
  $region26: #{tpu_custom_call.1} parent=0
    _
  %s5 = ssub.s32 1, %s3
  %s6 = scalar_select 0, %s5, %s3
  $region1: #{tpu_custom_call.1} parent=0
    #allocation2 [shape = 'u8[512]{0}', space=smem, size = 0x200, scoped, tag = 'input window, operand 0, single buffered']
    #allocation3 [shape = 's32[1]{0}', space=sflag, size = 0x4, scoped, tag = 'scoped memory for tpu_custom_call.1']
    #allocation4 [shape = 's32[1]{0}', space=sflag, size = 0x4, scoped, tag = 'scoped memory for tpu_custom_call.1']
    #allocation5 [shape = 's32[1]{0}', space=sflag, size = 0x4, scoped, tag = 'scoped memory for tpu_custom_call.1']
    #allocation6 [shape = 'u8[8192]{0}', space=vmem, size = 0x2000, scoped, tag = 'input window, operand 1, single buffered']
    #allocation7 [shape = 'u8[8192]{0}', space=vmem, size = 0x2000, scoped, tag = 'output window, operand 0, single buffered']
    %7 = vsyncpa [#allocation5], 0
    %8 = vsyncpa [#allocation3], 0
    %9 = vsyncpa [#allocation4], 0
    // Predicated region
    $region2: #{tpu_custom_call.1} parent=1 // pred_check
      _
    $region3: #{tpu_custom_call.1} parent=1 // pred_check_branch
      %11 = sbr.rel (0) target = $region5
    $region4: #{tpu_custom_call.1} parent=1 // pred_region
      %s13 = ssub.s32 16, 16
      %14 = vsyncadd [#allocation5], %s13
      %17 = dma.hbm_to_smem %s0, 16, [#allocation2], [#allocation5]
    $region5: #{tpu_custom_call.1} parent=1 // pred_fallthru
      _
    // Predicated region
    $region6: #{tpu_custom_call.1} parent=1 // pred_check
      _
    $region7: #{tpu_custom_call.1} parent=1 // pred_check_branch
      %19 = sbr.rel (0) target = $region9
    $region8: #{tpu_custom_call.1} parent=1 // pred_region
      %s21 = ssub.s32 256, 256
      %22 = vsyncadd [#allocation3], %s21
      %s24 = sshll.u32 [#allocation6], 4
      %s25 = int_to_ptr.vmem [resolvable:$true] %s24
      %27 = dma.hbm_to_vmem [thread:$0]  %s1, 256, %s25, [#allocation3]
    $region9: #{tpu_custom_call.1} parent=1 // pred_fallthru
      _
    // Predicated region
    $region10: #{tpu_custom_call.1} parent=1 // pred_check
      _
    $region11: #{tpu_custom_call.1} parent=1 // pred_check_branch
      %29 = sbr.rel (0) target = $region13
    $region12: #{tpu_custom_call.1} parent=1 // pred_region
      %30 = dma.done [#allocation5], 16
    $region13: #{tpu_custom_call.1} parent=1 // pred_fallthru
      _
    // Predicated region
    $region14: #{tpu_custom_call.1} parent=1 // pred_check
      _
    $region15: #{tpu_custom_call.1} parent=1 // pred_check_branch
      %32 = sbr.rel (0) target = $region17
    $region16: #{tpu_custom_call.1} parent=1 // pred_region
      %33 = dma.done [#allocation3], 256
    $region17: #{tpu_custom_call.1} parent=1 // pred_fallthru
      _
    %34 = sfence
    %s35 = sld [smem:[#allocation2]]
    %s36 = sld [smem:[#allocation2 + $0x1]]
    %v37 = vld [vmem:[#allocation6] sm:$0xff]
    %v38 = vld [vmem:[#allocation6 + $0x8] sm:$0xff]
    %v39 = vstv %s35
    %v40 = vsub.f32 %v37, %v39
    %v41 = vsub.f32 %v38, %v39
    %v42 = vstv %s36
    %v43 = vmul.f32 %v40, %v42
    %v44 = vmul.f32 %v41, %v42
    %45 = vst [vmem:[#allocation7] sm:$0xff] %v43
    %46 = vst [vmem:[#allocation7 + $0x8] sm:$0xff] %v44
    // Predicated region
    $region18: #{tpu_custom_call.1} parent=1 // pred_check
      _
    $region19: #{tpu_custom_call.1} parent=1 // pred_check_branch
      %48 = sbr.rel (0) target = $region21
    $region20: #{tpu_custom_call.1} parent=1 // pred_region
      %s50 = ssub.s32 256, 256
      %51 = vsyncadd [#allocation4], %s50
      %s53 = sshll.u32 [#allocation7], 4
      %s54 = int_to_ptr.vmem [resolvable:$true] %s53
      %56 = dma.vmem_to_hbm [thread:$0]  %s54, 256, %s2, [#allocation4]
    $region21: #{tpu_custom_call.1} parent=1 // pred_fallthru
      _
    // Predicated region
    $region22: #{tpu_custom_call.1} parent=1 // pred_check
      _
    $region23: #{tpu_custom_call.1} parent=1 // pred_check_branch
      %58 = sbr.rel (0) target = $region25
    $region24: #{tpu_custom_call.1} parent=1 // pred_region
      %59 = dma.done [#allocation4], 256
    $region25: #{tpu_custom_call.1} parent=1 // pred_fallthru
      _
    %60 = vsyncpa [#allocation3], 1
    %61 = vsyncpa [#allocation4], 1
    %62 = vsyncpa [#allocation5], 1

</llo_original>
